<compile_context>
chip_gen: v6e
topology: v6e:2x2x1
jax: 0.10.0
libtpu: 0.0.40
codegen_flags: <defaults>
</compile_context>

<pallas_src>
import jax
import jax.numpy as jnp
from jax.experimental import pallas as pl
from jax.experimental.pallas import tpu as pltpu


# --------------------------- chip / VMEM config ------------------------------
def _tpu_config():
    """Generation-aware VMEM capacity and tile targets."""
    kind = ""
    try:
        kind = jax.devices()[0].device_kind.lower()
    except Exception:
        pass
    is_v7 = "v7" in kind

    vmem_cap = None
    try:
        vmem_cap = int(pltpu.get_tpu_info().vmem_capacity_bytes)
    except Exception:
        vmem_cap = None
    if vmem_cap is None or vmem_cap <= 0:
        vmem_cap = (64 << 20) if is_v7 else (128 << 20)
    vmem_cap = max(32 << 20, min(vmem_cap, 128 << 20))
    if is_v7:
        vmem_cap = min(vmem_cap, 64 << 20)     # per-TC VMEM on v7x

    if is_v7:
        fwd_tiles = (512, 2048)                # ~4 MiB f32 blocks (3.2 TB/s HBM)
        fit_tiles = (2048, 1024)
    elif "v6" in kind:
        fwd_tiles = (512, 1024)                # ~2 MiB blocks
        fit_tiles = (1024, 512)
    else:                                      # v5e / unknown: conservative
        fwd_tiles = (512, 512)                 # ~1 MiB blocks
        fit_tiles = (1024, 512)

    return {
        "is_v7": is_v7,
        "vmem_cap": vmem_cap,
        "vmem_limit": int(vmem_cap * 0.90),    # explicit scoped-VMEM limit
        "fused_budget": int(vmem_cap * 0.70),  # ~44 MiB v7x, ~90 MiB v5e/v6e
        "tile_budget": int(vmem_cap * 0.45),   # for unfused fit/forward tiles
        "fwd_tiles": fwd_tiles,
        "fit_tiles": fit_tiles,
    }


# --------------------------- tiling helpers ----------------------------------
def _sublane_unit(dtype):
    """Min sublane tile: 8 for f32, 16 for bf16, 32 for int8/fp8."""
    return max(8, 32 // jnp.dtype(dtype).itemsize)


def _pick_tile(dim, unit, target):
    """Largest multiple of `unit` that divides `dim` and is <= target.

    Returns `dim` itself if dim <= target (full-extent block is always legal),
    and None if no suitable divisor exists."""
    if dim <= target:
        return dim
    t = (target // unit) * unit
    while t >= unit:
        if dim % t == 0:
            return t
        t -= unit
    return None


def _ensure_two_blocks(dim, tile, unit, enable):
    """On dual-TC chips (v7x), make sure a 'parallel' axis has >= 2 steps."""
    if not enable or tile is None or dim // tile >= 2:
        return tile
    half = _pick_tile(dim, unit, max(tile // 2, unit))
    if half is not None and dim // half >= 2:
        return half
    return tile


def _pick_2d_tiles(nrows, ncols, dtype, tn_target, tf_target, budget_bytes,
                   bytes_per_elem):
    """Divisor-based (rows, cols) tile pick with a VMEM-footprint guard.

    If a ragged dimension falls back to its full extent, the row tile is
    shrunk so bytes_per_elem * tn * tf stays under budget_bytes."""
    sub = _sublane_unit(dtype)
    tf = _pick_tile(ncols, 128, tf_target)
    if tf is None:
        tf = ncols                       # ragged F: full-extent lane block
    tn = _pick_tile(nrows, sub, tn_target)
    if tn is None:
        tn = nrows                       # ragged N: full-extent sublane block
    while tn > sub and bytes_per_elem * tn * tf > budget_bytes:
        cand = _pick_tile(nrows, sub, max(tn // 2, sub))
        if cand is None or cand >= tn:
            break
        tn = cand
    # TODO(synk): fully ragged shapes (both dims large with no nice divisors)
    # would need a pl.cdiv grid with masked edge blocks.
    return tn, tf


# --------------------------- fused fit + forward ------------------------------
def _fit_transform_kernel(x_ref, o_ref, mean_ref, std_ref):
    # Full (N, tf) column stripe in VMEM: compute stats, normalize, and emit
    # the scaled stripe plus (1, tf) mean/std.  X is read from HBM exactly
    # once (1R + 1W instead of 2R + 1W for separate fit + forward).
    x = x_ref[...].astype(jnp.float32)
    n = x.shape[0]
    mean = jnp.sum(x, axis=0, keepdims=True) * (1.0 / n)
    centered = x - mean
    # unbiased (ddof=1), matching torch.std default; N == 1 -> NaN (as torch).
    var = jnp.sum(centered * centered, axis=0, keepdims=True) / (n - 1)
    std = jnp.sqrt(var)
    inv_std = 1.0 / std                  # one exact divide per (1, tf) vector
    o_ref[...] = (centered * inv_std).astype(o_ref.dtype)
    mean_ref[...] = mean.astype(mean_ref.dtype)
    std_ref[...] = std.astype(std_ref.dtype)


def scaler_fit_transform(x, *, vmem_budget_bytes=None):
    """Fused fit + forward.  Returns (scaled, mean, std), or None if no legal
    (N, tf) column stripe fits the VMEM budget (caller falls back)."""
    N, F = x.shape
    cfg = _tpu_config()
    if vmem_budget_bytes is None:
        vmem_budget_bytes = cfg["fused_budget"]
    # Per feature column of the (N, tf) stripe:
    #   double-buffered in + out blocks              -> 4 * N * itemsize
    #   in-kernel f32 temporaries (upcast, centered) -> ~8 * N  (+ margin)
    bytes_per_col = 4 * N * jnp.dtype(x.dtype).itemsize + 12 * N
    max_tf = vmem_budget_bytes // max(bytes_per_col, 1)
    if max_tf < 1:
        return None
    if F <= max_tf:
        tf = F
    else:
        tf = _pick_tile(F, 128, max_tf)
        if tf is None:
            return None                  # stripe can't fit -> unfused path
    tf = _ensure_two_blocks(F, tf, 128, cfg["is_v7"])

    scaled, mean, std = pl.pallas_call(
        _fit_transform_kernel,
        out_shape=(
            jax.ShapeDtypeStruct((N, F), x.dtype),
            jax.ShapeDtypeStruct((1, F), x.dtype),
            jax.ShapeDtypeStruct((1, F), x.dtype),
        ),
        grid=(F // tf,),
        in_specs=[pl.BlockSpec((N, tf), lambda j: (0, j))],
        out_specs=[
            pl.BlockSpec((N, tf), lambda j: (0, j)),
            pl.BlockSpec((1, tf), lambda j: (0, j)),
            pl.BlockSpec((1, tf), lambda j: (0, j)),
        ],
        compiler_params=pltpu.CompilerParams(
            dimension_semantics=("parallel",),
            vmem_limit_bytes=cfg["vmem_limit"],
        ),
    )(x)
    return scaled, mean, std


# ------------------------------ tiled fit --------------------------------------
def scaler_fit(x, *, tn_target=None, tf_target=None):
    """mean/std over dim 0 (keepdim, unbiased), tiled over N so any N fits
    VMEM.  Uses a Chan/Welford chunk merge for numeric stability."""
    N, F = x.shape
    cfg = _tpu_config()
    if tn_target is None:
        tn_target = cfg["fit_tiles"][0]
    if tf_target is None:
        tf_target = cfg["fit_tiles"][1]
    tn, tf = _pick_2d_tiles(
        N, F, x.dtype, tn_target, tf_target, cfg["tile_budget"],
        bytes_per_elem=2 * jnp.dtype(x.dtype).itemsize + 12)
    tf = _ensure_two_blocks(F, tf, 128, cfg["is_v7"])
    n_row_steps = N // tn

    def fit_kernel(x_ref, mean_ref, std_ref, mean_acc, m2_acc):
        i = pl.program_id(1)              # row (reduction) axis, innermost

        @pl.when(i == 0)
        def _():
            mean_acc[...] = jnp.zeros_like(mean_acc)
            m2_acc[...] = jnp.zeros_like(m2_acc)

        # Chan chunk merge: no sumsq - N*mean^2 cancellation, single pass.
        xb = x_ref[...].astype(jnp.float32)                       # (tn, tf)
        chunk_mean = jnp.sum(xb, axis=0, keepdims=True) * (1.0 / tn)
        d = xb - chunk_mean
        chunk_m2 = jnp.sum(d * d, axis=0, keepdims=True)
        count = (i * tn).astype(jnp.float32)
        new_count = count + tn
        delta = chunk_mean - mean_acc[...]
        mean_acc[...] = mean_acc[...] + delta * (tn / new_count)
        m2_acc[...] = m2_acc[...] + chunk_m2 + delta * delta * (
            count * tn / new_count)

        @pl.when(i == pl.num_programs(1) - 1)
        def _():
            mean_ref[...] = mean_acc[...].astype(mean_ref.dtype)
            # unbiased (ddof=1), matching torch.std; N == 1 -> NaN (as torch).
            var = m2_acc[...] / jnp.float32(N - 1)
            std_ref[...] = jnp.sqrt(var).astype(std_ref.dtype)

    mean, std = pl.pallas_call(
        fit_kernel,
        out_shape=(
            jax.ShapeDtypeStruct((1, F), x.dtype),
            jax.ShapeDtypeStruct((1, F), x.dtype),
        ),
        grid=(F // tf, n_row_steps),      # reduction axis last
        in_specs=[pl.BlockSpec((tn, tf), lambda j, i: (i, j))],
        out_specs=[
            pl.BlockSpec((1, tf), lambda j, i: (0, j)),  # resident across i
            pl.BlockSpec((1, tf), lambda j, i: (0, j)),
        ],
        scratch_shapes=[
            pltpu.VMEM((1, tf), jnp.float32),
            pltpu.VMEM((1, tf), jnp.float32),
        ],
        compiler_params=pltpu.CompilerParams(
            dimension_semantics=("parallel", "arbitrary"),
            vmem_limit_bytes=cfg["vmem_limit"],
        ),
    )(x)
    return mean, std


# ------------------------------- affine apply -----------------------------------
def _affine_kernel(x_ref, scale_ref, shift_ref, o_ref):
    # Hot path is a single FMA per element; the divide was hoisted to the host.
    x = x_ref[...].astype(jnp.float32)
    o_ref[...] = (x * scale_ref[...] + shift_ref[...]).astype(o_ref.dtype)


def _apply_affine(x, scale, shift, *, tm_target=None, tf_target=None):
    """out = x * scale + shift, scale/shift broadcast along dim 0."""
    N, F = x.shape
    cfg = _tpu_config()
    if tm_target is None:
        tm_target = cfg["fwd_tiles"][0]
    if tf_target is None:
        tf_target = cfg["fwd_tiles"][1]
    sub = _sublane_unit(x.dtype)
    tm, tf = _pick_2d_tiles(
        N, F, x.dtype, tm_target, tf_target, cfg["tile_budget"],
        bytes_per_elem=4 * jnp.dtype(x.dtype).itemsize + 8)
    if cfg["is_v7"] and (N // tm) * (F // tf) < 2:
        tm = _ensure_two_blocks(N, tm, sub, True)

    scale = scale.astype(jnp.float32)
    shift = shift.astype(jnp.float32)

    return pl.pallas_call(
        _affine_kernel,
        out_shape=jax.ShapeDtypeStruct((N, F), x.dtype),
        # Column stripes outer, rows inner: the (1, tf) scale/shift block
        # index is constant across the inner axis, so Pallas skips their
        # re-DMA on every row step.
        grid=(F // tf, N // tm),
        in_specs=[
            pl.BlockSpec((tm, tf), lambda j, i: (i, j)),
            pl.BlockSpec((1, tf), lambda j, i: (0, j)),
            pl.BlockSpec((1, tf), lambda j, i: (0, j)),
        ],
        out_specs=pl.BlockSpec((tm, tf), lambda j, i: (i, j)),
        compiler_params=pltpu.CompilerParams(
            dimension_semantics=("parallel", "parallel"),
            vmem_limit_bytes=cfg["vmem_limit"],
        ),
    )(x, scale, shift)


def scaler_forward(x, mean, std, **kw):
    """(X - mean) / std == X * (1/std) + (-mean/std); divide hoisted out of
    the grid into a tiny (1, F) plain-JAX precompute (exact, not approx)."""
    scale = 1.0 / std.astype(jnp.float32)
    shift = (-mean.astype(jnp.float32)) * scale
    return _apply_affine(x, scale, shift, **kw)


def scaler_inverse_transform(x_scaled, mean, std, **kw):
    """X_scaled * std + mean, same affine kernel."""
    return _apply_affine(x_scaled, std, mean, **kw)


# ------------------------------- wrapper ---------------------------------------
class StandardScalerPallas:
    """Mirror of the PyTorch StandardScaler using Pallas TPU kernels."""

    def __init__(self):
        self.mean = None
        self.std = None

    def fit(self, X, **fit_kwargs):
        self.mean, self.std = scaler_fit(X, **fit_kwargs)

    def forward(self, X):
        return scaler_forward(X, self.mean, self.std)

    def fit_transform(self, X):
        """Fused fit + forward (1 read + 1 write of X); falls back to the
        tiled fit followed by forward when the fused stripe would not fit."""
        fused = scaler_fit_transform(X)
        if fused is None:
            self.fit(X)
            return self.forward(X)
        scaled, self.mean, self.std = fused
        return scaled

    def inverse_transform(self, X_scaled):
        return scaler_inverse_transform(X_scaled, self.mean, self.std)


if __name__ == "__main__":
    key = jax.random.PRNGKey(0)
    k1, _ = jax.random.split(key)
    N, F = 64, 96
    X = jax.random.normal(k1, (N, F), dtype=jnp.float32) * 3.0 + 1.5

    # Reference (torch.std is unbiased -> ddof=1).
    ref_mean = jnp.mean(X, axis=0, keepdims=True)
    ref_std = jnp.std(X, axis=0, keepdims=True, ddof=1)
    ref = (X - ref_mean) / ref_std

    # Path 1: fused fit_transform.
    scaler = StandardScalerPallas()
    out_fused = jax.block_until_ready(scaler.fit_transform(X))
    assert out_fused.shape == X.shape and out_fused.dtype == X.dtype
    assert jnp.allclose(scaler.mean, ref_mean, atol=1e-4, rtol=1e-4)
    assert jnp.allclose(scaler.std, ref_std, atol=1e-4, rtol=1e-4)
    assert jnp.allclose(out_fused, ref, atol=1e-4, rtol=1e-4)

    # Path 2: tiled fit (small row tile to exercise the chunk-merge
    # accumulator: 4 accumulation steps over N) + forward.
    scaler2 = StandardScalerPallas()
    scaler2.fit(X, tn_target=16)
    out = jax.block_until_ready(scaler2.forward(X))
    assert jnp.allclose(scaler2.mean, ref_mean, atol=1e-4, rtol=1e-4)
    assert jnp.allclose(scaler2.std, ref_std, atol=1e-4, rtol=1e-4)
    assert jnp.allclose(out, ref, atol=1e-4, rtol=1e-4)

    # inverse_transform round-trip (Pallas affine kernel).
    X_back = jax.block_until_ready(scaler.inverse_transform(out_fused))
    assert jnp.allclose(X_back, X, atol=1e-3, rtol=1e-3)

    print("KERNEL_OK")
</pallas_src>

<mosaic_0001>
module attributes {stable_mosaic.version = 11 : i64} {
  func.func @_fit_transform_kernel(%arg0: i32, %arg1: memref<64x96xf32, #tpu.memory_space<vmem>>, %arg2: memref<64x96xf32, #tpu.memory_space<vmem>>, %arg3: memref<1x96xf32, #tpu.memory_space<vmem>>, %arg4: memref<1x96xf32, #tpu.memory_space<vmem>>) attributes {dimension_semantics = [#tpu.dimension_semantics<parallel>], iteration_bounds = array<i64: 1>, scalar_prefetch = 0 : i64, scratch_operands = 0 : i64, tpu.core_type = #tpu.core_type<tc>, window_params = [{transform_indices = @transform_0, window_bounds = array<i64: 64, 96>}, {transform_indices = @transform_1, window_bounds = array<i64: 64, 96>}, {transform_indices = @transform_2, window_bounds = array<i64: 1, 96>}, {transform_indices = @transform_3, window_bounds = array<i64: 1, 96>}]} {
    %c0 = arith.constant 0 : index
    %c0_0 = arith.constant 0 : index
    %0 = vector.load %arg1[%c0, %c0_0] : memref<64x96xf32, #tpu.memory_space<vmem>>, vector<64x96xf32>
    %cst = arith.constant dense<0.000000e+00> : vector<96xf32>
    %1 = vector.multi_reduction <add>, %0, %cst [0] : vector<64x96xf32> to vector<96xf32>
    %2 = vector.shape_cast %1 : vector<96xf32> to vector<1x96xf32>
    %cst_1 = arith.constant 1.562500e-02 : f32
    %3 = vector.broadcast %cst_1 : f32 to vector<1x96xf32>
    %4 = arith.mulf %2, %3 : vector<1x96xf32>
    %5 = vector.broadcast %4 : vector<1x96xf32> to vector<64x96xf32>
    %6 = arith.subf %0, %5 : vector<64x96xf32>
    %7 = arith.mulf %6, %6 : vector<64x96xf32>
    %cst_2 = arith.constant dense<0.000000e+00> : vector<96xf32>
    %8 = vector.multi_reduction <add>, %7, %cst_2 [0] : vector<64x96xf32> to vector<96xf32>
    %9 = vector.shape_cast %8 : vector<96xf32> to vector<1x96xf32>
    %cst_3 = arith.constant 6.300000e+01 : f32
    %10 = vector.broadcast %cst_3 : f32 to vector<1x96xf32>
    %11 = arith.divf %9, %10 : vector<1x96xf32>
    %12 = math.sqrt %11 : vector<1x96xf32>
    %cst_4 = arith.constant 1.000000e+00 : f32
    %13 = vector.broadcast %cst_4 : f32 to vector<1x96xf32>
    %14 = arith.divf %13, %12 : vector<1x96xf32>
    %15 = vector.broadcast %14 : vector<1x96xf32> to vector<64x96xf32>
    %16 = arith.mulf %6, %15 : vector<64x96xf32>
    %c0_5 = arith.constant 0 : index
    %c0_6 = arith.constant 0 : index
    %17 = vector.load %arg2[%c0_5, %c0_6] : memref<64x96xf32, #tpu.memory_space<vmem>>, vector<64x96xf32>
    tpu.vector_store %arg2[%c0_5, %c0_6], %16 {strides = array<i32>} : memref<64x96xf32, #tpu.memory_space<vmem>>, vector<64x96xf32>,
    %c0_7 = arith.constant 0 : index
    %c0_8 = arith.constant 0 : index
    %18 = vector.load %arg3[%c0_7, %c0_8] : memref<1x96xf32, #tpu.memory_space<vmem>>, vector<1x96xf32>
    tpu.vector_store %arg3[%c0_7, %c0_8], %4 {strides = array<i32>} : memref<1x96xf32, #tpu.memory_space<vmem>>, vector<1x96xf32>,
    %c0_9 = arith.constant 0 : index
    %c0_10 = arith.constant 0 : index
    %19 = vector.load %arg4[%c0_9, %c0_10] : memref<1x96xf32, #tpu.memory_space<vmem>>, vector<1x96xf32>
    tpu.vector_store %arg4[%c0_9, %c0_10], %12 {strides = array<i32>} : memref<1x96xf32, #tpu.memory_space<vmem>>, vector<1x96xf32>,
    return
  }
  func.func @transform_0(%arg0: i32) -> (i32, i32) {
    %c0_i32 = arith.constant 0 : i32
    %c0_i32_0 = arith.constant 0 : i32
    return %c0_i32, %arg0 : i32, i32
  }
  func.func @transform_1(%arg0: i32) -> (i32, i32) {
    %c0_i32 = arith.constant 0 : i32
    %c0_i32_0 = arith.constant 0 : i32
    return %c0_i32, %arg0 : i32, i32
  }
  func.func @transform_2(%arg0: i32) -> (i32, i32) {
    %c0_i32 = arith.constant 0 : i32
    %c0_i32_0 = arith.constant 0 : i32
    return %c0_i32, %arg0 : i32, i32
  }
  func.func @transform_3(%arg0: i32) -> (i32, i32) {
    %c0_i32 = arith.constant 0 : i32
    %c0_i32_0 = arith.constant 0 : i32
    return %c0_i32, %arg0 : i32, i32
  }
}

</mosaic_0001>

<llo_original>
// kernel: tpu_custom_call.1
$region0: #{tpu_custom_call.1}
  #allocation0 [shape = 'u32[]', space=smem, size = 0x4, offset = 0x4, fixed_abs, tag = 'smem constant byte address 0x4 - core index']
  #allocation1 [shape = 'u32[144,128]{1,0:T(1,128)}', space=vmem, size = 0x12000, scoped, tag = 'internal scratch']
  %s0 = inlined_call_operand.hbm [shape: f32[64,96], index: 0, kind: input, shape index: {}]
  %s1 = inlined_call_operand.hbm [shape: f32[64,96], index: 1, kind: output, shape index: {0}]
  %s2 = inlined_call_operand.hbm [shape: f32[1,96], index: 2, kind: output, shape index: {1}]
  %s3 = inlined_call_operand.hbm [shape: f32[1,96], index: 3, kind: output, shape index: {2}]
  %4 = xla_tuple %s1, %s2, %s3
  %s5 = sld [smem:[#allocation0]]
  $region34: #{tpu_custom_call.1} parent=0
    _
  %s7 = ssub.s32 1, %s5
  %s8 = scalar_select 0, %s7, %s5
  $region1: #{tpu_custom_call.1} parent=0
    #allocation2 [shape = 'u8[32768]{0}', space=vmem, size = 0x8000, scoped, tag = 'input window, operand 0, single buffered']
    #allocation3 [shape = 's32[1]{0}', space=sflag, size = 0x4, scoped, tag = 'scoped memory for tpu_custom_call.1']
    #allocation4 [shape = 's32[1]{0}', space=sflag, size = 0x4, scoped, tag = 'scoped memory for tpu_custom_call.1']
    #allocation5 [shape = 'u8[32768]{0}', space=vmem, size = 0x8000, scoped, tag = 'output window, operand 0, single buffered']
    #allocation6 [shape = 'u8[512]{0}', space=vmem, size = 0x400, scoped, tag = 'output window, operand 1, single buffered']
    #allocation7 [shape = 's32[1]{0}', space=sflag, size = 0x4, scoped, tag = 'scoped memory for tpu_custom_call.1']
    #allocation8 [shape = 'u8[512]{0}', space=vmem, size = 0x400, scoped, tag = 'output window, operand 2, single buffered']
    %9 = vsyncpa [#allocation3], 0
    %10 = vsyncpa [#allocation4], 0
    %11 = vsyncpa [#allocation7], 0
    // Predicated region
    $region2: #{tpu_custom_call.1} parent=1 // pred_check
      _
    $region3: #{tpu_custom_call.1} parent=1 // pred_check_branch
      %13 = sbr.rel (0) target = $region5
    $region4: #{tpu_custom_call.1} parent=1 // pred_region
      %s15 = ssub.s32 1024, 1024
      %16 = vsyncadd [#allocation3], %s15
      %s17 = sshll.u32 [#allocation2], 4
      %s18 = int_to_ptr.vmem [resolvable:$true] %s17
      %23 = dma.hbm_to_vmem [thread:$0]  %s0, 1024, %s18, [#allocation3], 128, 128, 8
    $region5: #{tpu_custom_call.1} parent=1 // pred_fallthru
      _
    // Predicated region
    $region6: #{tpu_custom_call.1} parent=1 // pred_check
      _
    $region7: #{tpu_custom_call.1} parent=1 // pred_check_branch
      %25 = sbr.rel (0) target = $region9
    $region8: #{tpu_custom_call.1} parent=1 // pred_region
      %26 = dma.done [#allocation3], 1024
    $region9: #{tpu_custom_call.1} parent=1 // pred_fallthru
      _
    %v27 = vld [vmem:[#allocation2] sm:$0xff]
    %v28 = vld [vmem:[#allocation2 + $0x8] sm:$0xff]
    %v29 = vld [vmem:[#allocation2 + $0x10] sm:$0xff]
    %v30 = vld [vmem:[#allocation2 + $0x18] sm:$0xff]
    %v31 = vld [vmem:[#allocation2 + $0x20] sm:$0xff]
    %v32 = vld [vmem:[#allocation2 + $0x28] sm:$0xff]
    %v33 = vld [vmem:[#allocation2 + $0x30] sm:$0xff]
    %v34 = vld [vmem:[#allocation2 + $0x38] sm:$0xff]
    %vm35 = vcmask 785408
    %v36 = vsel %vm35, %v27, 0.0
    %v37 = vsel %vm35, %v28, 0.0
    %v38 = vadd.f32 %v36, %v37
    %v39 = vsel %vm35, %v29, 0.0
    %v40 = vadd.f32 %v38, %v39
    %v41 = vsel %vm35, %v30, 0.0
    %v42 = vadd.f32 %v40, %v41
    %v43 = vsel %vm35, %v31, 0.0
    %v44 = vadd.f32 %v42, %v43
    %v45 = vsel %vm35, %v32, 0.0
    %v46 = vadd.f32 %v44, %v45
    %v47 = vsel %vm35, %v33, 0.0
    %v48 = vadd.f32 %v46, %v47
    %v49 = vsel %vm35, %v34, 0.0
    %v50 = vadd.f32 %v48, %v49
    %v51 = vrot.slane %v50, 4
    %v52 = vadd.f32 %v50, %v51
    %v53 = vrot.slane %v52, 2
    %v54 = vadd.f32 %v52, %v53
    %v55 = vrot.slane %v54, 1
    %v56 = vadd.f32 %v54, %v55
    %v57 = vmul.f32 %v56, 0.015625
    %v58 = vsub.f32 %v27, %v57
    %v59 = vsub.f32 %v28, %v57
    %v60 = vsub.f32 %v29, %v57
    %v61 = vsub.f32 %v30, %v57
    %v62 = vsub.f32 %v31, %v57
    %v63 = vsub.f32 %v32, %v57
    %v64 = vsub.f32 %v33, %v57
    %v65 = vsub.f32 %v34, %v57
    %v66 = vmul.f32 %v58, %v58
    %v67 = vmul.f32 %v59, %v59
    %v68 = vmul.f32 %v60, %v60
    %v69 = vmul.f32 %v61, %v61
    %v70 = vmul.f32 %v62, %v62
    %v71 = vmul.f32 %v63, %v63
    %v72 = vmul.f32 %v64, %v64
    %v73 = vmul.f32 %v65, %v65
    %v74 = vsel %vm35, %v66, 0.0
    %v75 = vsel %vm35, %v67, 0.0
    %v76 = vadd.f32 %v74, %v75
    %v77 = vsel %vm35, %v68, 0.0
    %v78 = vadd.f32 %v76, %v77
    %v79 = vsel %vm35, %v69, 0.0
    %v80 = vadd.f32 %v78, %v79
    %v81 = vsel %vm35, %v70, 0.0
    %v82 = vadd.f32 %v80, %v81
    %v83 = vsel %vm35, %v71, 0.0
    %v84 = vadd.f32 %v82, %v83
    %v85 = vsel %vm35, %v72, 0.0
    %v86 = vadd.f32 %v84, %v85
    %v87 = vsel %vm35, %v73, 0.0
    %v88 = vadd.f32 %v86, %v87
    %v89 = vrot.slane %v88, 4
    %v90 = vadd.f32 %v88, %v89
    %v91 = vrot.slane %v90, 2
    %v92 = vadd.f32 %v90, %v91
    %v93 = vrot.slane %v92, 1
    %v94 = vadd.f32 %v92, %v93
    %v95 = vrcp.pop 63.0
    %v96 = vmul.f32 %v94, %v95
    %v97 = vrsqrt.pop %v96
    %v98 = vmul.f32 %v96, %v97
    %vm99 = vcmp.eq.f32.partialorder %v96, inf
    %v100 = vsel %vm99, %v96, %v98
    %vm101 = vcmp.eq.f32.partialorder %v96, 0.0
    %v102 = vand.u32 %v96, 2147483648
    %v103 = vsel %vm101, %v102, %v100
    %v104 = vrcp.pop %v103
    %v105 = vmul.f32 1.0, %v104
    %v106 = vmul.f32 %v58, %v105
    %v107 = vmul.f32 %v59, %v105
    %v108 = vmul.f32 %v60, %v105
    %v109 = vmul.f32 %v61, %v105
    %v110 = vmul.f32 %v62, %v105
    %v111 = vmul.f32 %v63, %v105
    %v112 = vmul.f32 %v64, %v105
    %v113 = vmul.f32 %v65, %v105
    %114 = vst.msk [vmem:[#allocation5] sm:$0xff] %vm35, %v106
    %115 = vst.msk [vmem:[#allocation5 + $0x8] sm:$0xff] %vm35, %v107
    %116 = vst.msk [vmem:[#allocation5 + $0x10] sm:$0xff] %vm35, %v108
    %117 = vst.msk [vmem:[#allocation5 + $0x18] sm:$0xff] %vm35, %v109
    %118 = vst.msk [vmem:[#allocation5 + $0x20] sm:$0xff] %vm35, %v110
    %119 = vst.msk [vmem:[#allocation5 + $0x28] sm:$0xff] %vm35, %v111
    %120 = vst.msk [vmem:[#allocation5 + $0x30] sm:$0xff] %vm35, %v112
    %121 = vst.msk [vmem:[#allocation5 + $0x38] sm:$0xff] %vm35, %v113
    %vm122 = vcmask 778240
    %123 = vst.msk [vmem:[#allocation6] sm:$0x1] %vm122, %v57
    %124 = vst.msk [vmem:[#allocation8] sm:$0x1] %vm122, %v103
    // Predicated region
    $region10: #{tpu_custom_call.1} parent=1 // pred_check
      _
    $region11: #{tpu_custom_call.1} parent=1 // pred_check_branch
      %126 = sbr.rel (0) target = $region13
    $region12: #{tpu_custom_call.1} parent=1 // pred_region
      %s128 = ssub.s32 1024, 1024
      %129 = vsyncadd [#allocation4], %s128
      %s130 = sshll.u32 [#allocation5], 4
      %s131 = int_to_ptr.vmem [resolvable:$true] %s130
      %136 = dma.vmem_to_hbm [thread:$0]  %s131, 1024, %s1, [#allocation4], 128, 128, 8
    $region13: #{tpu_custom_call.1} parent=1 // pred_fallthru
      _
    // Predicated region
    $region14: #{tpu_custom_call.1} parent=1 // pred_check
      _
    $region15: #{tpu_custom_call.1} parent=1 // pred_check_branch
      %138 = sbr.rel (0) target = $region17
    $region16: #{tpu_custom_call.1} parent=1 // pred_region
      %s140 = ssub.s32 16, 16
      %141 = vsyncadd [#allocation7], %s140
      %s143 = sshll.u32 [#allocation6], 4
      %s144 = int_to_ptr.vmem [resolvable:$true] %s143
      %146 = dma.vmem_to_hbm [thread:$0]  %s144, 16, %s2, [#allocation7]
    $region17: #{tpu_custom_call.1} parent=1 // pred_fallthru
      _
    // Predicated region
    $region18: #{tpu_custom_call.1} parent=1 // pred_check
      _
    $region19: #{tpu_custom_call.1} parent=1 // pred_check_branch
      %148 = sbr.rel (0) target = $region21
    $region20: #{tpu_custom_call.1} parent=1 // pred_region
      %s150 = ssub.s32 16, 16
      %151 = vsyncadd [#allocation7], %s150
      %s153 = sshll.u32 [#allocation8], 4
      %s154 = int_to_ptr.vmem [resolvable:$true] %s153
      %156 = dma.vmem_to_hbm [thread:$0]  %s154, 16, %s3, [#allocation7]
    $region21: #{tpu_custom_call.1} parent=1 // pred_fallthru
      _
    // Predicated region
    $region22: #{tpu_custom_call.1} parent=1 // pred_check
      _
    $region23: #{tpu_custom_call.1} parent=1 // pred_check_branch
      %158 = sbr.rel (0) target = $region25
    $region24: #{tpu_custom_call.1} parent=1 // pred_region
      %159 = dma.done [#allocation4], 1024
    $region25: #{tpu_custom_call.1} parent=1 // pred_fallthru
      _
    // Predicated region
    $region26: #{tpu_custom_call.1} parent=1 // pred_check
      _
    $region27: #{tpu_custom_call.1} parent=1 // pred_check_branch
      %161 = sbr.rel (0) target = $region29
    $region28: #{tpu_custom_call.1} parent=1 // pred_region
      %162 = dma.done [#allocation7], 16
    $region29: #{tpu_custom_call.1} parent=1 // pred_fallthru
      _
    // Predicated region
    $region30: #{tpu_custom_call.1} parent=1 // pred_check
      _
    $region31: #{tpu_custom_call.1} parent=1 // pred_check_branch
      %164 = sbr.rel (0) target = $region33
    $region32: #{tpu_custom_call.1} parent=1 // pred_region
      %165 = dma.done [#allocation7], 16
    $region33: #{tpu_custom_call.1} parent=1 // pred_fallthru
      _
    %166 = vsyncpa [#allocation3], 1
    %167 = vsyncpa [#allocation4], 1
    %168 = vsyncpa [#allocation7], 1

</llo_original>
